<compile_context>
chip_gen: v5e
topology: v5e:2x2
jax: 0.10.0
libtpu: 0.0.40
codegen_flags: <defaults>
</compile_context>

<pallas_src>
import functools

import jax
import jax.numpy as jnp
from jax.experimental import pallas as pl
from jax.experimental.pallas import tpu as pltpu

LANE = 128  # TPU lane width


def head_kernel(h_ref, w0_ref, b0_ref, w1_ref, b1_ref, out_ref, acc_ref, *, inv_hw):
    """Fused global-avg-pool + fc0 + fc1.

    h_ref  : (TB, THW, C) bf16  channels-last feature chunk (C on the lane axis)
    w0_ref : (C,  FC)  f32      b0_ref : (1, FC)  f32
    w1_ref : (FC, NCP) f32      b1_ref : (1, NCP) f32   (NCP = n_classes padded to 128)
    out_ref: (TB, NCP) f32
    acc_ref: (TB, C)   f32      pooling accumulator (lives across the HW grid axis)
    """
    hw_i = pl.program_id(1)

    @pl.when(hw_i == 0)
    def _init():
        acc_ref[...] = jnp.zeros_like(acc_ref)

    # Partial spatial sum of this HW chunk, accumulated in f32 (sublane reduce).
    # Only a (TB, C) f32 intermediate is ever live -- no full f32 feature copy.
    acc_ref[...] += jnp.sum(h_ref[...], axis=1, dtype=jnp.float32)

    @pl.when(hw_i == pl.num_programs(1) - 1)
    def _finalize():
        pooled = acc_ref[...] * inv_hw                                    # (TB, C) f32
        z0 = jnp.dot(pooled, w0_ref[...],
                     preferred_element_type=jnp.float32) + b0_ref[...]    # fc0 (f32)
        z1 = jnp.dot(z0, w1_ref[...],
                     preferred_element_type=jnp.float32) + b1_ref[...]    # fc1 (f32)
        out_ref[...] = z1                                                  # lane-dense vst


def _vmem_limit_bytes():
    # Per-generation VMEM limit: ~3/4 of physical, capped at 96 MiB
    # (v5e/v6e: 128 MiB physical -> 96 MiB; v7x: 64 MiB physical -> 48 MiB).
    try:
        cap = pltpu.get_tpu_info().vmem_capacity_bytes
    except Exception:
        cap = 128 * 1024 * 1024
    return min(cap * 3 // 4, 96 * 1024 * 1024)


def _pick_batch_tile(B):
    # Single tile when B fits one MXU-friendly block; otherwise the largest
    # power-of-two tile (<=128) that divides B so no batch padding is needed.
    if B <= 128:
        return B
    for tb in (128, 64, 32, 16, 8):
        if B % tb == 0:
            return tb
    return 128  # ragged batch: falls back to padding only the last tile


def _pick_hw_tile(HW, TB, C, feat_budget_bytes):
    # bf16 feature chunk, double-buffered by the pipeline: 4*TB*THW*C bytes.
    max_thw = max(8, feat_budget_bytes // (4 * TB * C))
    if HW <= max_thw:
        return HW
    thw = (max_thw // 8) * 8
    while thw >= 8 and HW % thw:      # THW must divide HW exactly (a ragged chunk
        thw -= 8                      # would pollute the pooling sum)
    return thw if thw >= 8 else HW


def prepare_head_params(w0, b0, w1, b1):
    """One-time parameter prep (do at model init, NOT per forward call):
    keep fc weights in f32 and zero-pad fc1's output dim to a 128-lane-dense NCP."""
    C, FC = w0.shape
    NC = w1.shape[1]
    NCP = max(LANE, pl.cdiv(NC, LANE) * LANE)
    return dict(
        w0=w0.astype(jnp.float32),
        b0=b0.reshape(1, FC).astype(jnp.float32),
        w1=jnp.pad(w1.astype(jnp.float32), ((0, 0), (0, NCP - NC))),
        b1=jnp.pad(b1.reshape(1, NC).astype(jnp.float32), ((0, 0), (0, NCP - NC))),
        n_classes=NC,
    )


def model_head(feat_nhwc, params, *, batch_tile=None, hw_tile=None):
    """feat_nhwc: (B, H, W, C) channels-last backbone feature map (bf16 preferred).

    Returns (B, n_classes) f32 logits = fc1(fc0(global_avg_pool(feat))).
    """
    B, H, W, C = feat_nhwc.shape
    HW = H * W
    w0, b0, w1, b1 = params["w0"], params["b0"], params["w1"], params["b1"]
    n_classes = params["n_classes"]
    FC = w0.shape[1]
    NCP = w1.shape[1]

    vmem_limit = _vmem_limit_bytes()
    TB = batch_tile if batch_tile is not None else _pick_batch_tile(B)
    THW = hw_tile if hw_tile is not None else _pick_hw_tile(HW, TB, C, vmem_limit // 2)
    assert HW % THW == 0 and (THW == HW or THW % 8 == 0), "bad HW tile"

    B_pad = pl.cdiv(B, TB) * TB

    # Contiguous collapse only (no transpose, no HBM round trip).
    h = feat_nhwc.reshape(B, HW, C)
    if h.dtype != jnp.bfloat16:
        # TODO(synk): fuse this cast into the backbone's final op so the head
        # never pays a separate HBM pass over the feature map.
        h = h.astype(jnp.bfloat16)
    if B_pad != B:  # only hit when no tile divides B (B > 128 and ragged)
        h = jnp.pad(h, ((0, B_pad - B), (0, 0), (0, 0)))

    kernel = functools.partial(head_kernel, inv_hw=1.0 / float(HW))

    cost = pl.CostEstimate(
        flops=2 * B_pad * C * FC + 2 * B_pad * FC * NCP + 2 * B_pad * HW * C,
        transcendentals=0,
        bytes_accessed=(B_pad * HW * C * 2                       # feature map (bf16)
                        + (C * FC + FC * NCP + FC + NCP) * 4     # weights/biases (f32)
                        + B_pad * NCP * 4),                      # output (f32)
    )

    out = pl.pallas_call(
        kernel,
        out_shape=jax.ShapeDtypeStruct((B_pad, NCP), jnp.float32),
        grid_spec=pltpu.PrefetchScalarGridSpec(
            num_scalar_prefetch=0,
            grid=(B_pad // TB, HW // THW),       # (batch tiles, HW reduction chunks)
            in_specs=[
                pl.BlockSpec((TB, THW, C), lambda b, s: (b, s, 0)),
                pl.BlockSpec((C, FC), lambda b, s: (0, 0)),     # loop-invariant:
                pl.BlockSpec((1, FC), lambda b, s: (0, 0)),     # constant block index,
                pl.BlockSpec((FC, NCP), lambda b, s: (0, 0)),   # DMA'd once, never
                pl.BlockSpec((1, NCP), lambda b, s: (0, 0)),    # re-fetched
            ],
            out_specs=pl.BlockSpec((TB, NCP), lambda b, s: (b, 0)),
            scratch_shapes=[pltpu.VMEM((TB, C), jnp.float32)],
        ),
        compiler_params=pltpu.CompilerParams(
            dimension_semantics=("parallel", "arbitrary"),
            vmem_limit_bytes=vmem_limit,
        ),
        cost_estimate=cost,
    )(h, w0, b0, w1, b1)

    return out[:B, :n_classes]


if __name__ == "__main__":
    # Small shapes consistent with the module's forward:
    #   batch=16, last_ch=128 (stands in for 1280), spatial=8x8,
    #   fc_ch=128 (stands in for 1280), n_classes=4.
    B, C, H, W = 16, 128, 8, 8
    FC, NC = 128, 4

    key = jax.random.PRNGKey(0)
    k_x, k_w0, k_b0, k_w1, k_b1 = jax.random.split(key, 5)

    # Synthetic backbone feature map, emitted channels-last in bf16 (as a TPU
    # backbone would; see TODO at top of file).
    x_feat = jax.random.normal(k_x, (B, H, W, C), dtype=jnp.float32).astype(jnp.bfloat16)

    # Deterministic Linear params (PyTorch default: U(-1/sqrt(in), 1/sqrt(in))).
    lim0 = 1.0 / (C ** 0.5)
    w0 = jax.random.uniform(k_w0, (C, FC), jnp.float32, -lim0, lim0)
    b0 = jax.random.uniform(k_b0, (FC,), jnp.float32, -lim0, lim0)
    lim1 = 1.0 / (FC ** 0.5)
    w1 = jax.random.uniform(k_w1, (FC, NC), jnp.float32, -lim1, lim1)
    b1 = jax.random.uniform(k_b1, (NC,), jnp.float32, -lim1, lim1)

    params = prepare_head_params(w0, b0, w1, b1)   # one-time weight prep

    # batch_tile=8, hw_tile=32 -> grid=(2, 2): exercises both the parallel batch
    # axis and the HW-accumulation init/finalize path at small shapes.
    out = model_head(x_feat, params, batch_tile=8, hw_tile=32)
    out = jax.block_until_ready(out)

    # Pure-JAX f32 reference on the same bf16 feature map.
    feat_f32 = x_feat.astype(jnp.float32).reshape(B, H * W, C)
    pooled_ref = jnp.mean(feat_f32, axis=1)                 # (B, C)
    ref = (pooled_ref @ w0 + b0) @ w1 + b1                  # (B, NC)
    assert out.shape == (B, NC)
    assert jnp.allclose(out, ref, atol=1e-2, rtol=1e-2), "mismatch vs reference"

    print("KERNEL_OK")
</pallas_src>

<mosaic_0001>
module attributes {stable_mosaic.version = 11 : i64} {
  func.func @head_kernel(%arg0: i32, %arg1: i32, %arg2: memref<8x32x128xbf16, #tpu.memory_space<vmem>>, %arg3: memref<128x128xf32, #tpu.memory_space<vmem>>, %arg4: memref<1x128xf32, #tpu.memory_space<vmem>>, %arg5: memref<128x128xf32, #tpu.memory_space<vmem>>, %arg6: memref<1x128xf32, #tpu.memory_space<vmem>>, %arg7: memref<8x128xf32, #tpu.memory_space<vmem>>, %arg8: memref<8x128xf32, #tpu.memory_space<vmem>>) attributes {dimension_semantics = [#tpu.dimension_semantics<parallel>, #tpu.dimension_semantics<arbitrary>], iteration_bounds = array<i64: 2, 2>, scalar_prefetch = 0 : i64, scratch_operands = 1 : i64, tpu.core_type = #tpu.core_type<tc>, window_params = [{transform_indices = @transform_0, window_bounds = array<i64: 8, 32, 128>}, {pipeline_mode = #tpu.pipeline_mode<synchronous>, transform_indices = @transform_1, window_bounds = array<i64: 128, 128>}, {pipeline_mode = #tpu.pipeline_mode<synchronous>, transform_indices = @transform_2, window_bounds = array<i64: 1, 128>}, {pipeline_mode = #tpu.pipeline_mode<synchronous>, transform_indices = @transform_3, window_bounds = array<i64: 128, 128>}, {pipeline_mode = #tpu.pipeline_mode<synchronous>, transform_indices = @transform_4, window_bounds = array<i64: 1, 128>}, {transform_indices = @transform_5, window_bounds = array<i64: 8, 128>}]} {
    %c0_i32 = arith.constant 0 : i32
    %0 = arith.cmpi eq, %arg1, %c0_i32 : i32
    %1 = arith.extui %0 : i1 to i32
    %c0_i32_0 = arith.constant 0 : i32
    %2 = arith.cmpi ne, %1, %c0_i32_0 : i32
    scf.if %2 {
      %cst_8 = arith.constant 0.000000e+00 : f32
      %12 = vector.broadcast %cst_8 : f32 to vector<8x128xf32>
      %c0_9 = arith.constant 0 : index
      %c0_10 = arith.constant 0 : index
      %13 = vector.load %arg8[%c0_9, %c0_10] : memref<8x128xf32, #tpu.memory_space<vmem>>, vector<8x128xf32>
      tpu.vector_store %arg8[%c0_9, %c0_10], %12 {strides = array<i32>} : memref<8x128xf32, #tpu.memory_space<vmem>>, vector<8x128xf32>,
    } else {
    }
    %c0 = arith.constant 0 : index
    %c0_1 = arith.constant 0 : index
    %3 = vector.load %arg8[%c0, %c0_1] : memref<8x128xf32, #tpu.memory_space<vmem>>, vector<8x128xf32>
    %c0_2 = arith.constant 0 : index
    %c0_3 = arith.constant 0 : index
    %c0_4 = arith.constant 0 : index
    %4 = vector.load %arg2[%c0_2, %c0_3, %c0_4] : memref<8x32x128xbf16, #tpu.memory_space<vmem>>, vector<8x32x128xbf16>
    %5 = arith.extf %4 : vector<8x32x128xbf16> to vector<8x32x128xf32>
    %cst = arith.constant dense<0.000000e+00> : vector<8x128xf32>
    %6 = vector.multi_reduction <add>, %5, %cst [1] : vector<8x32x128xf32> to vector<8x128xf32>
    %7 = arith.addf %3, %6 : vector<8x128xf32>
    %c0_5 = arith.constant 0 : index
    %c0_6 = arith.constant 0 : index
    %8 = vector.load %arg8[%c0_5, %c0_6] : memref<8x128xf32, #tpu.memory_space<vmem>>, vector<8x128xf32>
    tpu.vector_store %arg8[%c0_5, %c0_6], %7 {strides = array<i32>} : memref<8x128xf32, #tpu.memory_space<vmem>>, vector<8x128xf32>,
    %c1_i32 = arith.constant 1 : i32
    %9 = arith.cmpi eq, %arg1, %c1_i32 : i32
    %10 = arith.extui %9 : i1 to i32
    %c0_i32_7 = arith.constant 0 : i32
    %11 = arith.cmpi ne, %10, %c0_i32_7 : i32
    scf.if %11 {
      %c0_8 = arith.constant 0 : index
      %c0_9 = arith.constant 0 : index
      %12 = vector.load %arg8[%c0_8, %c0_9] : memref<8x128xf32, #tpu.memory_space<vmem>>, vector<8x128xf32>
      %cst_10 = arith.constant 1.562500e-02 : f32
      %13 = vector.broadcast %cst_10 : f32 to vector<8x128xf32>
      %14 = arith.mulf %12, %13 : vector<8x128xf32>
      %c0_11 = arith.constant 0 : index
      %c0_12 = arith.constant 0 : index
      %15 = vector.load %arg3[%c0_11, %c0_12] : memref<128x128xf32, #tpu.memory_space<vmem>>, vector<128x128xf32>
      %cst_13 = arith.constant dense<0.000000e+00> : vector<8x128xf32>
      %16 = tpu.matmul %14, %15, %cst_13 {dimension_numbers = #tpu.dot_dimension_numbers<[1], [0], [0], [1], [0, 0, 1, 1], [], []>} : vector<8x128xf32>, vector<128x128xf32>, vector<8x128xf32> -> vector<8x128xf32>
      %c0_14 = arith.constant 0 : index
      %c0_15 = arith.constant 0 : index
      %17 = vector.load %arg4[%c0_14, %c0_15] : memref<1x128xf32, #tpu.memory_space<vmem>>, vector<1x128xf32>
      %18 = vector.broadcast %17 : vector<1x128xf32> to vector<8x128xf32>
      %19 = arith.addf %16, %18 : vector<8x128xf32>
      %c0_16 = arith.constant 0 : index
      %c0_17 = arith.constant 0 : index
      %20 = vector.load %arg5[%c0_16, %c0_17] : memref<128x128xf32, #tpu.memory_space<vmem>>, vector<128x128xf32>
      %cst_18 = arith.constant dense<0.000000e+00> : vector<8x128xf32>
      %21 = tpu.matmul %19, %20, %cst_18 {dimension_numbers = #tpu.dot_dimension_numbers<[1], [0], [0], [1], [0, 0, 1, 1], [], []>} : vector<8x128xf32>, vector<128x128xf32>, vector<8x128xf32> -> vector<8x128xf32>
      %c0_19 = arith.constant 0 : index
      %c0_20 = arith.constant 0 : index
      %22 = vector.load %arg6[%c0_19, %c0_20] : memref<1x128xf32, #tpu.memory_space<vmem>>, vector<1x128xf32>
      %23 = vector.broadcast %22 : vector<1x128xf32> to vector<8x128xf32>
      %24 = arith.addf %21, %23 : vector<8x128xf32>
      %c0_21 = arith.constant 0 : index
      %c0_22 = arith.constant 0 : index
      %25 = vector.load %arg7[%c0_21, %c0_22] : memref<8x128xf32, #tpu.memory_space<vmem>>, vector<8x128xf32>
      tpu.vector_store %arg7[%c0_21, %c0_22], %24 {strides = array<i32>} : memref<8x128xf32, #tpu.memory_space<vmem>>, vector<8x128xf32>,
    } else {
    }
    return
  }
  func.func @transform_0(%arg0: i32, %arg1: i32) -> (i32, i32, i32) {
    %c0_i32 = arith.constant 0 : i32
    %c0_i32_0 = arith.constant 0 : i32
    return %arg0, %arg1, %c0_i32 : i32, i32, i32
  }
  func.func @transform_1(%arg0: i32, %arg1: i32) -> (i32, i32) {
    %c0_i32 = arith.constant 0 : i32
    %c0_i32_0 = arith.constant 0 : i32
    %c0_i32_1 = arith.constant 0 : i32
    return %c0_i32, %c0_i32_0 : i32, i32
  }
  func.func @transform_2(%arg0: i32, %arg1: i32) -> (i32, i32) {
    %c0_i32 = arith.constant 0 : i32
    %c0_i32_0 = arith.constant 0 : i32
    %c0_i32_1 = arith.constant 0 : i32
    return %c0_i32, %c0_i32_0 : i32, i32
  }
  func.func @transform_3(%arg0: i32, %arg1: i32) -> (i32, i32) {
    %c0_i32 = arith.constant 0 : i32
    %c0_i32_0 = arith.constant 0 : i32
    %c0_i32_1 = arith.constant 0 : i32
    return %c0_i32, %c0_i32_0 : i32, i32
  }
  func.func @transform_4(%arg0: i32, %arg1: i32) -> (i32, i32) {
    %c0_i32 = arith.constant 0 : i32
    %c0_i32_0 = arith.constant 0 : i32
    %c0_i32_1 = arith.constant 0 : i32
    return %c0_i32, %c0_i32_0 : i32, i32
  }
  func.func @transform_5(%arg0: i32, %arg1: i32) -> (i32, i32) {
    %c0_i32 = arith.constant 0 : i32
    %c0_i32_0 = arith.constant 0 : i32
    return %arg0, %c0_i32 : i32, i32
  }
}

</mosaic_0001>

<llo_original>
// kernel: tpu_custom_call.1
$region0: #{tpu_custom_call.1}
  #allocation0 [shape = 'u32[]', space=smem, size = 0x4, offset = 0x4, fixed_abs, tag = 'smem constant byte address 0x4 - core index']
  #allocation1 [shape = 'u32[72,128]{1,0:T(1,128)}', space=vmem, size = 0x9000, scoped, tag = 'internal scratch']
  #allocation2 [shape = 'f32[8,128]{1,0:T(8,128)}', space=vmem, size = 0x1000, scoped, tag = 'scratch operand']
  #allocation10 [shape = 's32[]', space=sflag, size = 0x4, offset = 0, fixed_abs, tag = 'sflag constant byte address 0x0 - dummy sync flag']
  %s0 = inlined_call_operand.hbm [shape: bf16[16,64,128], index: 0, kind: input, shape index: {}]
  %s1 = inlined_call_operand.hbm [shape: f32[128,128], index: 1, kind: input, shape index: {}]
  %s2 = inlined_call_operand.vmem [shape: f32[1,128], index: 2, kind: input, shape index: {}]
  %s3 = inlined_call_operand.hbm [shape: f32[128,128], index: 3, kind: input, shape index: {}]
  %s4 = inlined_call_operand.vmem [shape: f32[1,128], index: 4, kind: input, shape index: {}]
  %s5 = inlined_call_operand.hbm [shape: f32[16,128], index: 5, kind: output, shape index: {}]
  %s6 = sld [smem:[#allocation0]]
  $region73: #{tpu_custom_call.1} parent=0
    _
  %s8 = ssub.s32 1, %s6
  %s9 = scalar_select 0, %s8, %s6
  $region1: #{tpu_custom_call.1} parent=0
    #allocation3 [shape = 'u8[131072]{0}', space=vmem, size = 0x20000, scoped, tag = 'input window, operand 0']
    #allocation4 [shape = 's32[2]{0}', space=sflag, size = 0x8, scoped, tag = 'scoped memory for tpu_custom_call.1']
    #allocation5 [shape = 's32[2]{0}', space=sflag, size = 0x8, scoped, tag = 'scoped memory for tpu_custom_call.1']
    #allocation6 [shape = 'u8[65536]{0}', space=vmem, size = 0x10000, scoped, tag = 'input window, operand 1, single buffered']
    #allocation7 [shape = 's32[1]{0}', space=sflag, size = 0x4, scoped, tag = 'scoped memory for tpu_custom_call.1']
    #allocation8 [shape = 'u8[65536]{0}', space=vmem, size = 0x10000, scoped, tag = 'input window, operand 3, single buffered']
    #allocation9 [shape = 'u8[8192]{0}', space=vmem, size = 0x2000, scoped, tag = 'output window, operand 0']
    %10 = vsyncpa [#allocation4], 0
    %s11 = scalar_lea.sflag [#allocation4], 1
    %12 = vsyncpa %s11, 0
    %13 = vsyncpa [#allocation7], 0
    %14 = vsyncpa [#allocation5], 0
    %s15 = scalar_lea.sflag [#allocation5], 1
    %16 = vsyncpa %s15, 0
    loop: start=0, step=1, limit=6
    $region2: #{tpu_custom_call.1} parent=1 // loop_pre_header
      _
    $region3: #{tpu_custom_call.1} parent=1 // loop_header
      %s18 = sphi 0, %s22
      %p19 = scmp.ge.s32.totalorder %s18, 6
      %s25 = sphi 0, %s37
      %s26 = sphi 0, %s33
      %s27 = sphi 0, %s25
      %s28 = sphi 0, %s26
      %s29 = sphi 0, %s27
      %s30 = sphi 0, %s28
      %s42 = sphi 0, %s44
      %s45 = sphi 0, %s42
      %s46 = sphi 0, %s45
      %s62 = sphi 0, %s46
      %s66 = sphi 0, %s66
      %s68 = sphi 0, %s66
      %s69 = sphi 0, %s68
      %s83 = sphi 0, %s69
      %s87 = sphi 0, %s87
      %s89 = sphi 0, %s87
      %s90 = sphi 0, %s89
      %s104 = sphi 0, %s90
      %s108 = sphi 0, %s108
      %s110 = sphi 0, %s108
      %s111 = sphi 0, %s110
      %s125 = sphi 0, %s111
      %s129 = sphi 0, %s129
      %s131 = sphi 0, %s129
      %s132 = sphi 0, %s131
      %s146 = sphi 0, %s132
      %s152 = sphi 0, %s154
      %s155 = sphi 0, %s152
      %s156 = sphi 0, %s155
      %s172 = sphi 0, %s156
    $region4: #{tpu_custom_call.1} parent=1 // loop_header_branch
      %21 = sbr.rel (%p19) target = $region8
    $region5: #{tpu_custom_call.1} parent=1 // loop_body
      %s23 = ssub.s32 %s18, 1
      %s24 = ssub.s32 %s18, 2
      %s31 = sadd.s32 1, %s26
      %p32 = scmp.ge.s32.totalorder %s31, 2
      %s33 = scalar_select %p32, 0, %s31
      %s34 = sadd.s32 1, %s25
      %s35 = scalar_select %p32, %s34, %s25
      %p36 = scmp.ge.s32.totalorder %s35, 2
      %s37 = scalar_select %p36, 0, %s35
      %s38 = ssub.s32 %s25, %s37
      %s39 = ssub.s32 %s26, %s33
      %s40 = sor.u32 %s38, %s39
      %p41 = scmp.eq.s32.totalorder %s40, 0
      %s43 = sadd.s32 %s42, 1
      %s44 = scalar_select %p41, %s42, %s43
      %p47 = pneg %p41
      %p48 = scmp.eq.s32.totalorder %s18, 3
      %p49 = por %p47, %p48
      %p50 = scmp.ne.s32.totalorder %s42, %s45
      %p51 = scmp.eq.s32.totalorder %s18, 0
      %p52 = por %p50, %p51
      %p53 = scmp.ne.s32.totalorder %s42, %s45
      %p54 = scmp.eq.s32.totalorder %s23, 3
      %p55 = por %p53, %p54
      %p56 = scmp.ne.s32.totalorder %s45, %s46
      %p57 = scmp.eq.s32.totalorder %s23, 0
      %p58 = por %p56, %p57
      %p59 = scmp.ne.s32.totalorder %s45, %s46
      %p60 = scmp.eq.s32.totalorder %s24, 3
      %p61 = por %p59, %p60
      %p63 = scmp.ne.s32.totalorder %s46, %s62
      %p64 = scmp.eq.s32.totalorder %s24, 0
      %p65 = por %p63, %p64
      %s67 = sadd.s32 %s66, 1
      %p70 = scmp.eq.s32.totalorder %s18, 3
      %p71 = scmp.ne.s32.totalorder %s66, %s68
      %p72 = scmp.eq.s32.totalorder %s18, 0
      %p73 = por %p71, %p72
      %p74 = scmp.ne.s32.totalorder %s66, %s68
      %p75 = scmp.eq.s32.totalorder %s23, 3
      %p76 = por %p74, %p75
      %p77 = scmp.ne.s32.totalorder %s68, %s69
      %p78 = scmp.eq.s32.totalorder %s23, 0
      %p79 = por %p77, %p78
      %p80 = scmp.ne.s32.totalorder %s68, %s69
      %p81 = scmp.eq.s32.totalorder %s24, 3
      %p82 = por %p80, %p81
      %p84 = scmp.ne.s32.totalorder %s69, %s83
      %p85 = scmp.eq.s32.totalorder %s24, 0
      %p86 = por %p84, %p85
      %s88 = sadd.s32 %s87, 1
      %p91 = scmp.eq.s32.totalorder %s18, 3
      %p92 = scmp.ne.s32.totalorder %s87, %s89
      %p93 = scmp.eq.s32.totalorder %s18, 0
      %p94 = por %p92, %p93
      %p95 = scmp.ne.s32.totalorder %s87, %s89
      %p96 = scmp.eq.s32.totalorder %s23, 3
      %p97 = por %p95, %p96
      %p98 = scmp.ne.s32.totalorder %s89, %s90
      %p99 = scmp.eq.s32.totalorder %s23, 0
      %p100 = por %p98, %p99
      %p101 = scmp.ne.s32.totalorder %s89, %s90
      %p102 = scmp.eq.s32.totalorder %s24, 3
      %p103 = por %p101, %p102
      %p105 = scmp.ne.s32.totalorder %s90, %s104
      %p106 = scmp.eq.s32.totalorder %s24, 0
      %p107 = por %p105, %p106
      %s109 = sadd.s32 %s108, 1
      %p112 = scmp.eq.s32.totalorder %s18, 3
      %p113 = scmp.ne.s32.totalorder %s108, %s110
      %p114 = scmp.eq.s32.totalorder %s18, 0
      %p115 = por %p113, %p114
      %p116 = scmp.ne.s32.totalorder %s108, %s110
      %p117 = scmp.eq.s32.totalorder %s23, 3
      %p118 = por %p116, %p117
      %p119 = scmp.ne.s32.totalorder %s110, %s111
      %p120 = scmp.eq.s32.totalorder %s23, 0
      %p121 = por %p119, %p120
      %p122 = scmp.ne.s32.totalorder %s110, %s111
      %p123 = scmp.eq.s32.totalorder %s24, 3
      %p124 = por %p122, %p123
      %p126 = scmp.ne.s32.totalorder %s111, %s125
      %p127 = scmp.eq.s32.totalorder %s24, 0
      %p128 = por %p126, %p127
      %s130 = sadd.s32 %s129, 1
      %p133 = scmp.eq.s32.totalorder %s18, 3
      %p134 = scmp.ne.s32.totalorder %s129, %s131
      %p135 = scmp.eq.s32.totalorder %s18, 0
      %p136 = por %p134, %p135
      %p137 = scmp.ne.s32.totalorder %s129, %s131
      %p138 = scmp.eq.s32.totalorder %s23, 3
      %p139 = por %p137, %p138
      %p140 = scmp.ne.s32.totalorder %s131, %s132
      %p141 = scmp.eq.s32.totalorder %s23, 0
      %p142 = por %p140, %p141
      %p143 = scmp.ne.s32.totalorder %s131, %s132
      %p144 = scmp.eq.s32.totalorder %s24, 3
      %p145 = por %p143, %p144
      %p147 = scmp.ne.s32.totalorder %s132, %s146
      %p148 = scmp.eq.s32.totalorder %s24, 0
      %p149 = por %p147, %p148
      %s150 = ssub.s32 %s25, %s37
      %p151 = scmp.eq.s32.totalorder %s150, 0
      %s153 = sadd.s32 %s152, 1
      %s154 = scalar_select %p151, %s152, %s153
      %p157 = pneg %p151
      %p158 = scmp.eq.s32.totalorder %s18, 3
      %p159 = por %p157, %p158
      %p160 = scmp.ne.s32.totalorder %s152, %s155
      %p161 = scmp.eq.s32.totalorder %s18, 0
      %p162 = por %p160, %p161
      %p163 = scmp.ne.s32.totalorder %s152, %s155
      %p164 = scmp.eq.s32.totalorder %s23, 3
      %p165 = por %p163, %p164
      %p166 = scmp.ne.s32.totalorder %s155, %s156
      %p167 = scmp.eq.s32.totalorder %s23, 0
      %p168 = por %p166, %p167
      %p169 = scmp.ne.s32.totalorder %s155, %s156
      %p170 = scmp.eq.s32.totalorder %s24, 3
      %p171 = por %p169, %p170
      %p173 = scmp.ne.s32.totalorder %s156, %s172
      %p174 = scmp.eq.s32.totalorder %s24, 0
      %p175 = por %p173, %p174
      %p176 = scmp.le.s32.totalorder 1, %s18
      %p177 = scmp.lt.s32.totalorder %s18, 5
      %p178 = pnand %p176, %p177
      %p179 = pneg %p178
      // Predicated region
      $region9: #{tpu_custom_call.1} parent=5 // pred_check
        _
      $region10: #{tpu_custom_call.1} parent=5 // pred_check_branch
        %181 = sbr.rel (%p178) target = $region12
      $region11: #{tpu_custom_call.1} parent=5 // pred_region
        %s182 = ssub.s32 %s18, 1
        // Predicated region
        $region13: #{tpu_custom_call.1} parent=11 // pred_check
          %p183 = pneg %p79
        $region14: #{tpu_custom_call.1} parent=11 // pred_check_branch
          %185 = sbr.rel (%p183) target = $region16
        $region15: #{tpu_custom_call.1} parent=11 // pred_region
          %187 = vsyncadd [#allocation7], 0
          %s188 = sshll.u32 %s1, 4
          %s189 = int_to_ptr.hbm [resolvable:$true] %s188
          %s190 = sshll.u32 [#allocation6], 4
          %s191 = int_to_ptr.vmem [resolvable:$true] %s190
          %196 = dma.hbm_to_vmem [thread:$0]  %s189, 2048, %s191, [#allocation7], 128, 128, 8
        $region16: #{tpu_custom_call.1} parent=11 // pred_fallthru
          _
        // Predicated region
        $region17: #{tpu_custom_call.1} parent=11 // pred_check
          %p197 = pneg %p100
        $region18: #{tpu_custom_call.1} parent=11 // pred_check_branch
          %199 = sbr.rel (%p197) target = $region20
        $region19: #{tpu_custom_call.1} parent=11 // pred_region
          _
        $region20: #{tpu_custom_call.1} parent=11 // pred_fallthru
          _
        // Predicated region
        $region21: #{tpu_custom_call.1} parent=11 // pred_check
          %p200 = pneg %p121
        $region22: #{tpu_custom_call.1} parent=11 // pred_check_branch
          %202 = sbr.rel (%p200) target = $region24
        $region23: #{tpu_custom_call.1} parent=11 // pred_region
          %204 = vsyncadd [#allocation7], 0
          %s205 = sshll.u32 %s3, 4
          %s206 = int_to_ptr.hbm [resolvable:$true] %s205
          %s207 = sshll.u32 [#allocation8], 4
          %s208 = int_to_ptr.vmem [resolvable:$true] %s207
          %213 = dma.hbm_to_vmem [thread:$0]  %s206, 2048, %s208, [#allocation7], 128, 128, 8
        $region24: #{tpu_custom_call.1} parent=11 // pred_fallthru
          _
        // Predicated region
        $region25: #{tpu_custom_call.1} parent=11 // pred_check
          %p214 = pneg %p142
        $region26: #{tpu_custom_call.1} parent=11 // pred_check_branch
          %216 = sbr.rel (%p214) target = $region28
        $region27: #{tpu_custom_call.1} parent=11 // pred_region
          _
        $region28: #{tpu_custom_call.1} parent=11 // pred_fallthru
          _
      $region12: #{tpu_custom_call.1} parent=5 // pred_fallthru
        _
      %p217 = scmp.lt.s32.totalorder %s18, 4
      // Predicated region
      $region29: #{tpu_custom_call.1} parent=5 // pred_check
        %p218 = pneg %p217
      $region30: #{tpu_custom_call.1} parent=5 // pred_check_branch
        %220 = sbr.rel (%p218) target = $region32
      $region31: #{tpu_custom_call.1} parent=5 // pred_region
        // Predicated region
        $region33: #{tpu_custom_call.1} parent=31 // pred_check
          %p221 = pneg %p52
        $region34: #{tpu_custom_call.1} parent=31 // pred_check_branch
          %223 = sbr.rel (%p221) target = $region36
        $region35: #{tpu_custom_call.1} parent=31 // pred_region
          #allocation11 [shape = 'u32[6]{0}', space=smem, size = 0x18, scoped, tag = 'DMA stride descriptor']
          %s224 = sand.u32 %s42, 1
          %s225 = scalar_lea.sflag [#allocation4], %s224
          %s226 = sand.u32 %s42, 1
          %s227 = smul.addr %s226, 128
          %s228 = scalar_lea.vmem [#allocation3], %s227
          %s229 = smul.u32 8, %s25
          %s230 = smul.u32 4, %s26
          %232 = vsyncadd %s225, 0
          %s233 = smul.addr %s229, 8
          %s234 = sadd.s32 %s230, %s233
          %s235 = smul.addr %s234, 4
          %s236 = scalar_lea.hbm %s0, %s235
          %s238 = sshll.u32 1, 14
          %s239 = sxor.u32 4294967295, %s238
          %s241 = sld [smem:[#allocation0]]
          %s242 = sadd.s32 2, %s241
          %s244 = sshll.u32 7, 26
          %s245 = sxor.u32 4294967295, %s244
          %s246 = sand.u32 0, %s245
          %s247 = sshll.u32 %s242, 26
          %s248 = sor.u32 %s246, %s247
          %s249 = sshll.u32 %s236, 4
          %s250 = int_to_ptr.hbm [resolvable:$true] %s249
          %s251 = sshll.u32 %s228, 4
          %s252 = int_to_ptr.vmem [resolvable:$true] %s251
          %258 = sst [smem:[#allocation11]] 512
          %s259 = scalar_lea.smem [#allocation11], 1
          %260 = sst [smem:[%s259]] 256
          %s261 = scalar_lea.smem [#allocation11], 2
          %262 = sst [smem:[%s261]] 4
          %s263 = scalar_lea.smem [#allocation11], 3
          %264 = sst [smem:[%s263]] 64
          %s265 = scalar_lea.smem [#allocation11], 4
          %266 = sst [smem:[%s265]] 64
          %s267 = scalar_lea.smem [#allocation11], 5
          %268 = sst [smem:[%s267]] 4
          %270 = dma.general %s250, 2048, %s252, %s225, [#allocation10], [#allocation11], %s248, 0
        $region36: #{tpu_custom_call.1} parent=31 // pred_fallthru
          _
      $region32: #{tpu_custom_call.1} parent=5 // pred_fallthru
        _
      %p271 = scmp.le.s32.totalorder 1, %s18
      %p272 = scmp.lt.s32.totalorder %s18, 5
      %p273 = pnand %p271, %p272
      %p274 = pneg %p273
      // Predicated region
      $region37: #{tpu_custom_call.1} parent=5 // pred_check
        _
      $region38: #{tpu_custom_call.1} parent=5 // pred_check_branch
        %276 = sbr.rel (%p273) target = $region40
      $region39: #{tpu_custom_call.1} parent=5 // pred_region
        %s277 = ssub.s32 %s18, 1
        %s278 = sand.u32 %s45, 1
        %s279 = scalar_lea.sflag [#allocation4], %s278
        %s280 = sand.u32 %s45, 1
        %s281 = smul.addr %s280, 128
        %s282 = scalar_lea.vmem [#allocation3], %s281
        // Predicated region
        $region41: #{tpu_custom_call.1} parent=39 // pred_check
          %p283 = pneg %p58
        $region42: #{tpu_custom_call.1} parent=39 // pred_check_branch
          %285 = sbr.rel (%p283) target = $region44
        $region43: #{tpu_custom_call.1} parent=39 // pred_region
          %287 = dma.done %s279, 2048
        $region44: #{tpu_custom_call.1} parent=39 // pred_fallthru
          _
        // Predicated region
        $region45: #{tpu_custom_call.1} parent=39 // pred_check
          %p288 = pneg %p79
        $region46: #{tpu_custom_call.1} parent=39 // pred_check_branch
          %290 = sbr.rel (%p288) target = $region48
        $region47: #{tpu_custom_call.1} parent=39 // pred_region
          %292 = dma.done [#allocation7], 2048
        $region48: #{tpu_custom_call.1} parent=39 // pred_fallthru
          _
        // Predicated region
        $region49: #{tpu_custom_call.1} parent=39 // pred_check
          %p293 = pneg %p121
        $region50: #{tpu_custom_call.1} parent=39 // pred_check_branch
          %295 = sbr.rel (%p293) target = $region52
        $region51: #{tpu_custom_call.1} parent=39 // pred_region
          %297 = dma.done [#allocation7], 2048
        $region52: #{tpu_custom_call.1} parent=39 // pred_fallthru
          _
        %s298 = sand.u32 %s45, 1
        %s299 = scalar_lea.sflag [#allocation4], %s298
        %s300 = sand.u32 %s45, 1
        %s301 = smul.addr %s300, 128
        %s302 = scalar_lea.vmem [#allocation3], %s301
        %p303 = pneg %p58
        %p304 = pneg %p55
        %p305 = pneg %p79
        %p306 = pneg %p76
        %p307 = pneg %p100
        %p308 = pneg %p97
        %p309 = pneg %p121
        %p310 = pneg %p118
        %p311 = pneg %p142
        %p312 = pneg %p139
        %p313 = pneg %p168
        %p314 = pneg %p165
        %s315 = sand.u32 %s155, 1
        %s316 = scalar_lea.sflag [#allocation5], %s315
        %s317 = sand.u32 %s155, 1
        %s318 = smul.addr %s317, 8
        %s319 = scalar_lea.vmem [#allocation9], %s318
        %s320 = smul.u32 8, %s27
        %s321 = smul.u32 4, %s28
        %p322 = scmp.eq.s32.totalorder %s28, 0
        // Predicated region
        $region53: #{tpu_custom_call.1} parent=39 // pred_check
          %p323 = pneg %p322
        $region54: #{tpu_custom_call.1} parent=39 // pred_check_branch
          %325 = sbr.rel (%p323) target = $region56
        $region55: #{tpu_custom_call.1} parent=39 // pred_region
          %326 = vst [vmem:[#allocation2] sm:$0xff] 0.0
        $region56: #{tpu_custom_call.1} parent=39 // pred_fallthru
          _
        %v327 = vld [vmem:[#allocation2] sm:$0xff]
        %v328 = vld [vmem:[%s282] sm:$0xf]
        %v329 = vld [vmem:[%s282 + $0x4] sm:$0xf]
        %v330 = vld [vmem:[%s282 + $0x8] sm:$0xf]
        %v331 = vld [vmem:[%s282 + $0xc] sm:$0xf]
        %v332 = vld [vmem:[%s282 + $0x10] sm:$0xf]
        %v333 = vld [vmem:[%s282 + $0x14] sm:$0xf]
        %v334 = vld [vmem:[%s282 + $0x18] sm:$0xf]
        %v335 = vld [vmem:[%s282 + $0x1c] sm:$0xf]
        %v336 = vld [vmem:[%s282 + $0x20] sm:$0xf]
        %v337 = vld [vmem:[%s282 + $0x24] sm:$0xf]
        %v338 = vld [vmem:[%s282 + $0x28] sm:$0xf]
        %v339 = vld [vmem:[%s282 + $0x2c] sm:$0xf]
        %v340 = vld [vmem:[%s282 + $0x30] sm:$0xf]
        %v341 = vld [vmem:[%s282 + $0x34] sm:$0xf]
        %v342 = vld [vmem:[%s282 + $0x38] sm:$0xf]
        %v343 = vld [vmem:[%s282 + $0x3c] sm:$0xf]
        %v344 = vld [vmem:[%s282 + $0x40] sm:$0xf]
        %v345 = vld [vmem:[%s282 + $0x44] sm:$0xf]
        %v346 = vld [vmem:[%s282 + $0x48] sm:$0xf]
        %v347 = vld [vmem:[%s282 + $0x4c] sm:$0xf]
        %v348 = vld [vmem:[%s282 + $0x50] sm:$0xf]
        %v349 = vld [vmem:[%s282 + $0x54] sm:$0xf]
        %v350 = vld [vmem:[%s282 + $0x58] sm:$0xf]
        %v351 = vld [vmem:[%s282 + $0x5c] sm:$0xf]
        %v352 = vld [vmem:[%s282 + $0x60] sm:$0xf]
        %v353 = vld [vmem:[%s282 + $0x64] sm:$0xf]
        %v354 = vld [vmem:[%s282 + $0x68] sm:$0xf]
        %v355 = vld [vmem:[%s282 + $0x6c] sm:$0xf]
        %v356 = vld [vmem:[%s282 + $0x70] sm:$0xf]
        %v357 = vld [vmem:[%s282 + $0x74] sm:$0xf]
        %v358 = vld [vmem:[%s282 + $0x78] sm:$0xf]
        %v359 = vld [vmem:[%s282 + $0x7c] sm:$0xf]
        %v360 = vunpack.c.l.bf16 %v328
        %v361 = vunpack.c.l.bf16 %v329
        %v362 = vunpack.c.l.bf16 %v330
        %v363 = vunpack.c.l.bf16 %v331
        %v364 = vunpack.c.l.bf16 %v332
        %v365 = vunpack.c.l.bf16 %v333
        %v366 = vunpack.c.l.bf16 %v334
        %v367 = vunpack.c.l.bf16 %v335
        %v368 = vunpack.c.l.bf16 %v336
        %v369 = vunpack.c.l.bf16 %v337
        %v370 = vunpack.c.l.bf16 %v338
        %v371 = vunpack.c.l.bf16 %v339
        %v372 = vunpack.c.l.bf16 %v340
        %v373 = vunpack.c.l.bf16 %v341
        %v374 = vunpack.c.l.bf16 %v342
        %v375 = vunpack.c.l.bf16 %v343
        %v376 = vunpack.c.l.bf16 %v344
        %v377 = vunpack.c.l.bf16 %v345
        %v378 = vunpack.c.l.bf16 %v346
        %v379 = vunpack.c.l.bf16 %v347
        %v380 = vunpack.c.l.bf16 %v348
        %v381 = vunpack.c.l.bf16 %v349
        %v382 = vunpack.c.l.bf16 %v350
        %v383 = vunpack.c.l.bf16 %v351
        %v384 = vunpack.c.l.bf16 %v352
        %v385 = vunpack.c.l.bf16 %v353
        %v386 = vunpack.c.l.bf16 %v354
        %v387 = vunpack.c.l.bf16 %v355
        %v388 = vunpack.c.l.bf16 %v356
        %v389 = vunpack.c.l.bf16 %v357
        %v390 = vunpack.c.l.bf16 %v358
        %v391 = vunpack.c.l.bf16 %v359
        %v392 = vadd.f32 %v360, %v361
        %v393 = vadd.f32 %v392, %v362
        %v394 = vadd.f32 %v393, %v363
        %v395 = vrot.slane %v394, 4
        %v396 = vadd.f32 %v394, %v395
        %v397 = vrot.slane %v396, 2
        %v398 = vadd.f32 %v396, %v397
        %v399 = vrot.slane %v398, 1
        %v400 = vadd.f32 %v398, %v399
        %v401 = vadd.f32 %v364, %v365
        %v402 = vadd.f32 %v401, %v366
        %v403 = vadd.f32 %v402, %v367
        %v404 = vrot.slane %v403, 4
        %v405 = vadd.f32 %v403, %v404
        %v406 = vrot.slane %v405, 2
        %v407 = vadd.f32 %v405, %v406
        %v408 = vrot.slane %v407, 1
        %v409 = vadd.f32 %v407, %v408
        %v410 = vadd.f32 %v368, %v369
        %v411 = vadd.f32 %v410, %v370
        %v412 = vadd.f32 %v411, %v371
        %v413 = vrot.slane %v412, 4
        %v414 = vadd.f32 %v412, %v413
        %v415 = vrot.slane %v414, 2
        %v416 = vadd.f32 %v414, %v415
        %v417 = vrot.slane %v416, 1
        %v418 = vadd.f32 %v416, %v417
        %v419 = vadd.f32 %v372, %v373
        %v420 = vadd.f32 %v419, %v374
        %v421 = vadd.f32 %v420, %v375
        %v422 = vrot.slane %v421, 4
        %v423 = vadd.f32 %v421, %v422
        %v424 = vrot.slane %v423, 2
        %v425 = vadd.f32 %v423, %v424
        %v426 = vrot.slane %v425, 1
        %v427 = vadd.f32 %v425, %v426
        %v428 = vadd.f32 %v376, %v377
        %v429 = vadd.f32 %v428, %v378
        %v430 = vadd.f32 %v429, %v379
        %v431 = vrot.slane %v430, 4
        %v432 = vadd.f32 %v430, %v431
        %v433 = vrot.slane %v432, 2
        %v434 = vadd.f32 %v432, %v433
        %v435 = vrot.slane %v434, 1
        %v436 = vadd.f32 %v434, %v435
        %v437 = vadd.f32 %v380, %v381
        %v438 = vadd.f32 %v437, %v382
        %v439 = vadd.f32 %v438, %v383
        %v440 = vrot.slane %v439, 4
        %v441 = vadd.f32 %v439, %v440
        %v442 = vrot.slane %v441, 2
        %v443 = vadd.f32 %v441, %v442
        %v444 = vrot.slane %v443, 1
        %v445 = vadd.f32 %v443, %v444
        %v446 = vadd.f32 %v384, %v385
        %v447 = vadd.f32 %v446, %v386
        %v448 = vadd.f32 %v447, %v387
        %v449 = vrot.slane %v448, 4
        %v450 = vadd.f32 %v448, %v449
        %v451 = vrot.slane %v450, 2
        %v452 = vadd.f32 %v450, %v451
        %v453 = vrot.slane %v452, 1
        %v454 = vadd.f32 %v452, %v453
        %v455 = vadd.f32 %v388, %v389
        %v456 = vadd.f32 %v455, %v390
        %v457 = vadd.f32 %v456, %v391
        %v458 = vrot.slane %v457, 4
        %v459 = vadd.f32 %v457, %v458
        %v460 = vrot.slane %v459, 2
        %v461 = vadd.f32 %v459, %v460
        %v462 = vrot.slane %v461, 1
        %v463 = vadd.f32 %v461, %v462
        %vm472 = vcmask 1041409
        %v473 = vsel %vm472, %v409, %v400
        %vm474 = vcmask 1042434
        %v475 = vsel %vm474, %v418, %v473
        %vm476 = vcmask 1043459
        %v477 = vsel %vm476, %v427, %v475
        %vm478 = vcmask 1044484
        %v479 = vsel %vm478, %v436, %v477
        %vm480 = vcmask 1045509
        %v481 = vsel %vm480, %v445, %v479
        %vm482 = vcmask 1046534
        %v483 = vsel %vm482, %v454, %v481
        %vm484 = vcmask 1047559
        %v485 = vsel %vm484, %v463, %v483
        %v487 = vadd.f32 %v327, %v485
        %488 = vst [vmem:[#allocation2] sm:$0xff] %v487
        %p489 = scmp.eq.s32.totalorder %s28, 1
        // Predicated region
        $region57: #{tpu_custom_call.1} parent=39 // pred_check
          %p490 = pneg %p489
        $region58: #{tpu_custom_call.1} parent=39 // pred_check_branch
          %492 = sbr.rel (%p490) target = $region60
        $region59: #{tpu_custom_call.1} parent=39 // pred_region
          %v493 = vld [vmem:[#allocation2] sm:$0xff]
          %v494 = vmul.f32 %v493, 0.015625
          %v495 = vld [vmem:[#allocation6] sm:$0xff]
          %v496 = vld [vmem:[#allocation6 + $0x8] sm:$0xff]
          %v497 = vld [vmem:[#allocation6 + $0x10] sm:$0xff]
          %v498 = vld [vmem:[#allocation6 + $0x18] sm:$0xff]
          %v499 = vld [vmem:[#allocation6 + $0x20] sm:$0xff]
          %v500 = vld [vmem:[#allocation6 + $0x28] sm:$0xff]
          %v501 = vld [vmem:[#allocation6 + $0x30] sm:$0xff]
          %v502 = vld [vmem:[#allocation6 + $0x38] sm:$0xff]
          %v503 = vld [vmem:[#allocation6 + $0x40] sm:$0xff]
          %v504 = vld [vmem:[#allocation6 + $0x48] sm:$0xff]
          %v505 = vld [vmem:[#allocation6 + $0x50] sm:$0xff]
          %v506 = vld [vmem:[#allocation6 + $0x58] sm:$0xff]
          %v507 = vld [vmem:[#allocation6 + $0x60] sm:$0xff]
          %v508 = vld [vmem:[#allocation6 + $0x68] sm:$0xff]
          %v509 = vld [vmem:[#allocation6 + $0x70] sm:$0xff]
          %v510 = vld [vmem:[#allocation6 + $0x78] sm:$0xff]
          %v511 = vld [vmem:[%s2] sm:$0x1]
          %v513 = vperm.slane %v511, 0
          %515 = vmatpush.msra.mxu0 %v510
          %516 = vmatpush.msra.mxu0 %v509
          %517 = vmatpush.msra.mxu0 %v508
          %518 = vmatpush.msra.mxu0 %v507
          %519 = vmatpush.msra.mxu0 %v506
          %520 = vmatpush.msra.mxu0 %v505
          %521 = vmatpush.msra.mxu0 %v504
          %522 = vmatpush.msra.mxu0 %v503
          %523 = vmatpush.msra.mxu0 %v502
          %524 = vmatpush.msra.mxu0 %v501
          %525 = vmatpush.msra.mxu0 %v500
          %526 = vmatpush.msra.mxu0 %v499
          %527 = vmatpush.msra.mxu0 %v498
          %528 = vmatpush.msra.mxu0 %v497
          %529 = vmatpush.msra.mxu0 %v496
          %530 = vmatpush.msra.mxu0 %v495
          %531 = vmatmul.f32.gmra.mxu0 %v494
          %v532 = vpop.f32.mrf.mxu0
          %v533 = vadd.f32 %v513, %v532
          %534 = vdwg.mxu0
          %v535 = vld [vmem:[#allocation8] sm:$0xff]
          %v536 = vld [vmem:[#allocation8 + $0x8] sm:$0xff]
          %v537 = vld [vmem:[#allocation8 + $0x10] sm:$0xff]
          %v538 = vld [vmem:[#allocation8 + $0x18] sm:$0xff]
          %v539 = vld [vmem:[#allocation8 + $0x20] sm:$0xff]
          %v540 = vld [vmem:[#allocation8 + $0x28] sm:$0xff]
          %v541 = vld [vmem:[#allocation8 + $0x30] sm:$0xff]
          %v542 = vld [vmem:[#allocation8 + $0x38] sm:$0xff]
          %v543 = vld [vmem:[#allocation8 + $0x40] sm:$0xff]
          %v544 = vld [vmem:[#allocation8 + $0x48] sm:$0xff]
          %v545 = vld [vmem:[#allocation8 + $0x50] sm:$0xff]
          %v546 = vld [vmem:[#allocation8 + $0x58] sm:$0xff]
          %v547 = vld [vmem:[#allocation8 + $0x60] sm:$0xff]
          %v548 = vld [vmem:[#allocation8 + $0x68] sm:$0xff]
          %v549 = vld [vmem:[#allocation8 + $0x70] sm:$0xff]
          %v550 = vld [vmem:[#allocation8 + $0x78] sm:$0xff]
          %v551 = vld [vmem:[%s4] sm:$0x1]
          %v553 = vperm.slane %v551, 0
          %555 = vmatpush.msra.mxu0 %v550
          %556 = vmatpush.msra.mxu0 %v549
          %557 = vmatpush.msra.mxu0 %v548
          %558 = vmatpush.msra.mxu0 %v547
          %559 = vmatpush.msra.mxu0 %v546
          %560 = vmatpush.msra.mxu0 %v545
          %561 = vmatpush.msra.mxu0 %v544
          %562 = vmatpush.msra.mxu0 %v543
          %563 = vmatpush.msra.mxu0 %v542
          %564 = vmatpush.msra.mxu0 %v541
          %565 = vmatpush.msra.mxu0 %v540
          %566 = vmatpush.msra.mxu0 %v539
          %567 = vmatpush.msra.mxu0 %v538
          %568 = vmatpush.msra.mxu0 %v537
          %569 = vmatpush.msra.mxu0 %v536
          %570 = vmatpush.msra.mxu0 %v535
          %571 = vmatmul.f32.gmra.mxu0 %v533
          %v572 = vpop.f32.mrf.mxu0
          %v573 = vadd.f32 %v553, %v572
          %574 = vdwg.mxu0
          %575 = vst [vmem:[%s319] sm:$0xff] %v573
        $region60: #{tpu_custom_call.1} parent=39 // pred_fallthru
          _
        %s576 = sand.u32 %s155, 1
        %s577 = scalar_lea.sflag [#allocation5], %s576
        %s578 = sand.u32 %s155, 1
        %s579 = smul.addr %s578, 8
        %s580 = scalar_lea.vmem [#allocation9], %s579
        // Predicated region
        $region61: #{tpu_custom_call.1} parent=39 // pred_check
          %p581 = pneg %p165
        $region62: #{tpu_custom_call.1} parent=39 // pred_check_branch
          %583 = sbr.rel (%p581) target = $region64
        $region63: #{tpu_custom_call.1} parent=39 // pred_region
          %585 = vsyncadd %s577, 0
          %s586 = smul.addr %s27, 8
          %s587 = scalar_lea.hbm %s5, %s586
          %s589 = sshll.u32 %s580, 4
          %s590 = int_to_ptr.vmem [resolvable:$true] %s589
          %s591 = sshll.u32 %s587, 4
          %s592 = int_to_ptr.hbm [resolvable:$true] %s591
          %594 = dma.vmem_to_hbm [thread:$0]  %s590, 128, %s592, %s577
        $region64: #{tpu_custom_call.1} parent=39 // pred_fallthru
          _
      $region40: #{tpu_custom_call.1} parent=5 // pred_fallthru
        _
      %p595 = scmp.le.s32.totalorder 2, %s18
      // Predicated region
      $region65: #{tpu_custom_call.1} parent=5 // pred_check
        %p596 = pneg %p595
      $region66: #{tpu_custom_call.1} parent=5 // pred_check_branch
        %598 = sbr.rel (%p596) target = $region68
      $region67: #{tpu_custom_call.1} parent=5 // pred_region
        %s599 = ssub.s32 %s18, 2
        // Predicated region
        $region69: #{tpu_custom_call.1} parent=67 // pred_check
          %p600 = pneg %p171
        $region70: #{tpu_custom_call.1} parent=67 // pred_check_branch
          %602 = sbr.rel (%p600) target = $region72
        $region71: #{tpu_custom_call.1} parent=67 // pred_region
          %s603 = sand.u32 %s156, 1
          %s604 = scalar_lea.sflag [#allocation5], %s603
          %s605 = sand.u32 %s156, 1
          %s606 = smul.addr %s605, 8
          %s607 = scalar_lea.vmem [#allocation9], %s606
          %609 = dma.done %s604, 128
        $region72: #{tpu_custom_call.1} parent=67 // pred_fallthru
          _
      $region68: #{tpu_custom_call.1} parent=5 // pred_fallthru
        _
    $region6: #{tpu_custom_call.1} parent=1 // loop_footer
      %s22 = sadd.s32 1, %s18
    $region7: #{tpu_custom_call.1} parent=1 // loop_footer_branch
      %17 = sbr.rel target = $region3
    $region8: #{tpu_custom_call.1} parent=1 // loop_exit
      _
    %610 = vsyncpa [#allocation4], 1
    %s611 = scalar_lea.sflag [#allocation4], 1
    %612 = vsyncpa %s611, 1
    %613 = vsyncpa [#allocation7], 1
    %614 = vsyncpa [#allocation5], 1
    %s615 = scalar_lea.sflag [#allocation5], 1
    %616 = vsyncpa %s615, 1

</llo_original>
